<compile_context>
chip_gen: v7x
topology: tpu7x:2x2x1
jax: 0.10.0
libtpu: 0.0.40
codegen_flags: <defaults>
</compile_context>

<pallas_src>
import functools

import jax
import jax.numpy as jnp
from jax import lax
from jax.experimental import pallas as pl
from jax.experimental.pallas import tpu as pltpu


# ----------------------------------------------------------------------------
# Fused corner_net kernel: the whole network (backbone stub + both corner
# branches + all six 1x1 output heads) runs as ONE pallas_call over grid=(N,),
# batch-parallel.  Changes vs. the previous version (per perf review):
#   * pad/cols im2col scratch is bf16 (operands were cast to bf16 at the MXU
#     anyway) -> halves the dominant VMEM<->VMEM im2col store traffic,
#   * tl/br branches are fused per stage with tap-block-diagonal weights, so
#     there are only 4 im2col passes (stem-fed 4C conv, merge conv, out conv,
#     conv_relu conv) and every pad/cols store is 64-lane dense,
#   * corner pooling is done with XLU pltpu.roll (sublane rotations) + iota
#     masks directly on the flat (HW, C) views -- no (H,3W,C) shift scratch,
#     no concatenate-with-zeros relayout copies, no full-buffer zeroing,
#   * only the 1-pixel conv border of the pad scratch is zeroed,
#   * vmem_limit_bytes is sized from the actual buffers (bounded for v7x).
# ----------------------------------------------------------------------------
def _corner_net_kernel(x_ref, stem_w_ref, stem_b_ref,
                       w_abij_ref, b_abij_ref,
                       w_cb_ref, b_cb_ref,
                       w_1x1_ref, b_1x1_ref,
                       w_out_ref, b_out_ref,
                       w_cr_ref, b_cr_ref,
                       w_head_ref, b_head_ref,
                       o_ref,
                       pad_ref, cols_ref,
                       *, roll_matches_numpy):
    _, H, W, Cin = x_ref.shape
    C = stem_w_ref.shape[1]
    HW = H * W
    C2 = pad_ref.shape[-1]            # = 2*C (fused [tl | br] channel width)
    bf16 = jnp.bfloat16

    # Zero only the 1-pixel conv-padding border of the bf16 im2col source; the
    # conv bodies below always rewrite the interior channels they read, so no
    # full-buffer zeroing is needed (the old (H,3W,C) pool scratch is gone).
    zrow = jnp.zeros((1, W + 2, C2), bf16)
    pad_ref[0:1, :, :] = zrow
    pad_ref[H + 1:H + 2, :, :] = zrow
    zcol = jnp.zeros((H + 2, 1, C2), bf16)
    pad_ref[:, 0:1, :] = zcol
    pad_ref[:, W + 1:W + 2, :] = zcol

    def mxu(a, w):
        # bf16 MXU matmul with f32 accumulation (epilogue math stays f32).
        return jnp.dot(a.astype(bf16), w, preferred_element_type=jnp.float32)

    def conv3x3(parts, w, b, relu):
        # 3x3 "same" conv of the channel-concatenated `parts` as ONE K=9*cin
        # MXU matmul:
        #   1) write each part (bf16) into the interior of the border-zeroed
        #      (H+2, W+2, 2C) scratch at its channel offset (in-kernel pad,
        #      no wrapper jnp.pad, no explicit jnp.concatenate of tl|br),
        #   2) im2col the 9 taps into the (H*W, 9*cin) bf16 scratch,
        #   3) a single MXU matmul + folded-BN shift (+ relu).
        cin = 0
        for part in parts:
            c = part.shape[-1]
            pad_ref[1:H + 1, 1:W + 1, cin:cin + c] = (
                part.reshape(H, W, c).astype(bf16))
            cin += c
        for dy in range(3):
            for dx in range(3):
                t = dy * 3 + dx
                cols_ref[:, t * cin:(t + 1) * cin] = (
                    pad_ref[dy:dy + H, dx:dx + W, 0:cin].reshape(HW, cin))
        y = jnp.dot(cols_ref[:, 0:9 * cin], w,
                    preferred_element_type=jnp.float32) + b
        return jnp.maximum(y, 0.0) if relu else y                 # (HW, Cout)

    # ---- corner pooling ------------------------------------------------------
    # Running max along H / W done directly on the flat (HW, C) views with XLU
    # sublane rotations (pltpu.roll) + iota masks.  Pooled inputs are
    # post-ReLU (>= 0), so masking invalid partner rows to 0 equals -inf.
    row_idx = lax.broadcasted_iota(jnp.int32, (HW, C), 0)          # flat row r
    w_idx = lax.broadcasted_iota(jnp.int32, (H, W, C), 1).reshape(HW, C)

    def shift_rows(v, k):
        # Returns s with s[r] = v[(r + k) % HW]  (k may be negative).  The
        # shift amount is derived from the probed roll convention so pooling
        # direction is correct regardless of pltpu.roll's rotation sign.
        amt = (-k) % HW if roll_matches_numpy else k % HW
        return pltpu.roll(v, amt, 0)

    def pool_h(x2d, suffix):
        # suffix=True : top pool,    out[h] = max_{h' >= h} x[h']
        # suffix=False: bottom pool, out[h] = max_{h' <= h} x[h']
        s = 1
        while s < H:
            d = s * W
            if suffix:
                partner = jnp.where(row_idx < HW - d, shift_rows(x2d, d), 0.0)
            else:
                partner = jnp.where(row_idx >= d, shift_rows(x2d, -d), 0.0)
            x2d = jnp.maximum(x2d, partner)
            s *= 2
        return x2d

    def pool_w(x2d, suffix):
        # suffix=True : left pool,  out[w] = max_{w' >= w} x[w']
        # suffix=False: right pool, out[w] = max_{w' <= w} x[w']
        s = 1
        while s < W:
            if suffix:
                partner = jnp.where(w_idx < W - s, shift_rows(x2d, s), 0.0)
            else:
                partner = jnp.where(w_idx >= s, shift_rows(x2d, -s), 0.0)
            x2d = jnp.maximum(x2d, partner)
            s *= 2
        return x2d

    # ---- backbone stand-in: 1x1 conv + bias + relu ---------------------------
    # TODO(synk): the ResNet50 backbone (self.features) is not implemented; a
    # 1x1 conv projecting the input to `inplanes` channels stands in for it.
    xs = jnp.maximum(
        mxu(x_ref[0].reshape(HW, Cin), stem_w_ref[...]) + stem_b_ref[...], 0.0)

    # ---- conv_bn_relu{1,2,4,5}(x): one lane-dense Cout=4C matmul -------------
    y4 = conv3x3([xs], w_abij_ref[...], b_abij_ref[...], relu=True)   # (HW, 4C)

    a_p = pool_h(y4[:, 0 * C:1 * C], suffix=True)      # top pool    (tl)
    b_p = pool_w(y4[:, 1 * C:2 * C], suffix=True)      # left pool   (tl)
    i_p = pool_h(y4[:, 2 * C:3 * C], suffix=False)     # bottom pool (br)
    j_p = pool_w(y4[:, 3 * C:4 * C], suffix=False)     # right pool  (br)

    # ---- conv_bn_{tl,br} fused over the [a+b | i+j] 2C-channel input ---------
    cb = conv3x3([a_p + b_p, i_p + j_p], w_cb_ref[...], b_cb_ref[...],
                 relu=False)                                          # (HW, 2C)

    # ---- conv_bn_1x1_{tl,br}: one Cout=2C matmul, add + relu fused -----------
    ck = mxu(xs, w_1x1_ref[...]) + b_1x1_ref[...]                     # (HW, 2C)
    pre = jnp.maximum(ck + cb, 0.0)                # [relu(c+ab) | relu(k+ij)]

    # ---- conv_bn_relu{3,6} fused (tap-block-diagonal, Cout=2C) ---------------
    out2 = conv3x3([pre], w_out_ref[...], b_out_ref[...], relu=True)  # (HW, 2C)

    # ---- conv_relu{1..6} fused (Cout=6C) + block-diagonal 1x1 heads ----------
    r6 = conv3x3([out2], w_cr_ref[...], b_cr_ref[...], relu=True)     # (HW, 6C)
    head = mxu(r6, w_head_ref[...]) + b_head_ref[...]                 # (HW, 2hp)

    # NOTE: the output stays (HW, 2hp); a channel-major/lane-dense layout would
    # need an in-kernel (HW,2hp)->(2hp,HW) transpose whose cost/lowering risk
    # outweighs this ~16 KiB slab (the wrapper-side transpose is negligible).
    o_ref[0] = head.astype(o_ref.dtype)


# ----------------------------------------------------------------------------
# One-time probe of pltpu.roll's rotation direction.
# ----------------------------------------------------------------------------
def _roll_probe_kernel(x_ref, o_ref):
    o_ref[...] = pltpu.roll(x_ref[...], 1, 0)


def roll_matches_numpy_convention():
    """True iff pltpu.roll(x, s, ax)[i] == x[(i - s) % n] (jnp.roll convention).

    The corner-pooling shift amounts are derived from this flag so the pooling
    direction is correct under either rotation convention.
    """
    x = jnp.tile(jnp.arange(8, dtype=jnp.float32)[:, None], (1, 128))
    y = pl.pallas_call(
        _roll_probe_kernel,
        out_shape=jax.ShapeDtypeStruct((8, 128), jnp.float32),
    )(x)
    return bool(y[1, 0] == x[0, 0])


# ----------------------------------------------------------------------------
# Parameter init (deterministic, synthetic).  BN is eval-mode:
#   y = conv(x) * scale + shift, scale = gamma / sqrt(var + eps),
#   shift = beta - mean * scale.
# ----------------------------------------------------------------------------
def _bn_fold(key, c, eps=1e-5):
    k1, k2, k3, k4 = jax.random.split(key, 4)
    gamma = 1.0 + 0.1 * jax.random.normal(k1, (c,), jnp.float32)
    beta = 0.1 * jax.random.normal(k2, (c,), jnp.float32)
    mean = 0.1 * jax.random.normal(k3, (c,), jnp.float32)
    var = 1.0 + 0.1 * jax.random.uniform(k4, (c,), jnp.float32)
    scale = gamma / jnp.sqrt(var + eps)
    shift = beta - mean * scale
    return scale, shift


def _conv_bn_params(key, kh, kw, cin, cout):
    k1, k2 = jax.random.split(key)
    w = 0.05 * jax.random.normal(k1, (kh, kw, cin, cout), jnp.float32)
    scale, shift = _bn_fold(k2, cout)
    if kh == 1 and kw == 1:
        w = w.reshape(cin, cout)
    return (w, scale, shift)


def _conv_bias_params(key, kh, kw, cin, cout):
    k1, k2 = jax.random.split(key)
    w = 0.05 * jax.random.normal(k1, (kh, kw, cin, cout), jnp.float32)
    bias = 0.05 * jax.random.normal(k2, (cout,), jnp.float32)
    if kh == 1 and kw == 1:
        w = w.reshape(cin, cout)
    return (w, jnp.ones((cout,), jnp.float32), bias)


def init_params(key, in_ch, inplanes, num_classes):
    keys = iter(jax.random.split(key, 32))
    p = {}
    # TODO(synk): ResNet50 backbone (self.features) is not implemented; a 1x1
    # conv "stem" projects the input to `inplanes` channels as a stand-in.
    p["stem"] = _conv_bias_params(next(keys), 1, 1, in_ch, inplanes)
    for name in ["cbr1", "cbr2", "cbr3", "cbr4", "cbr5", "cbr6", "cb_tl", "cb_br"]:
        p[name] = _conv_bn_params(next(keys), 3, 3, inplanes, inplanes)
    for name in ["cb1x1_tl", "cb1x1_br"]:
        p[name] = _conv_bn_params(next(keys), 1, 1, inplanes, inplanes)
    for name in ["cr1", "cr2", "cr3", "cr4", "cr5", "cr6"]:
        p[name] = _conv_bias_params(next(keys), 3, 3, inplanes, inplanes)
    p["out_ht_tl"] = _conv_bias_params(next(keys), 1, 1, inplanes, num_classes)
    p["out_ht_br"] = _conv_bias_params(next(keys), 1, 1, inplanes, num_classes)
    p["out_eb_tl"] = _conv_bias_params(next(keys), 1, 1, inplanes, 1)
    p["out_eb_br"] = _conv_bias_params(next(keys), 1, 1, inplanes, 1)
    p["out_of_tl"] = _conv_bias_params(next(keys), 1, 1, inplanes, 2)
    p["out_of_br"] = _conv_bias_params(next(keys), 1, 1, inplanes, 2)
    return p


# ----------------------------------------------------------------------------
# One-time parameter prep: fold BN scales into the conv weights, fuse parallel
# convs lane-dense, fuse the tl/br branches via tap-block-diagonal weights,
# build block-diagonal heads, and cast matmul weights to bf16 (biases f32).
# ----------------------------------------------------------------------------
def pack_params(p):
    def fold3(name):
        w, s, b = p[name]                                     # (3,3,Cin,Cout)
        return (w * s[None, None, None, :]).reshape(-1, w.shape[-1]), b

    def fold1(name):
        w, s, b = p[name]                                     # (Cin, Cout)
        return w * s[None, :], b

    stem_w, stem_b = fold1("stem")
    C = stem_w.shape[1]
    nc = p["out_ht_tl"][0].shape[-1]
    hp = ((nc + 3 + 7) // 8) * 8              # per-branch head channels, padded

    def tap_block_diag(wa, wb):
        # Per-tap block-diagonal fusion of two 3x3 convs acting on the
        # channel-concatenated [tl | br] input: for tap t, rows [t*2C, t*2C+C)
        # map the tl channels to the first Ca outputs and rows
        # [t*2C+C, (t+1)*2C) map the br channels to the remaining Cb outputs.
        ca, cb = wa.shape[1], wb.shape[1]
        wa = wa.reshape(9, C, ca)
        wb = wb.reshape(9, C, cb)
        w = jnp.zeros((9, 2 * C, ca + cb), jnp.float32)
        w = w.at[:, 0:C, 0:ca].set(wa).at[:, C:2 * C, ca:ca + cb].set(wb)
        return w.reshape(9 * 2 * C, ca + cb)

    # conv_bn_relu{1,2,4,5}: all read the same x -> one (9C, 4C) matmul.
    abij = [fold3(n) for n in ("cbr1", "cbr2", "cbr4", "cbr5")]
    w_abij = jnp.concatenate([w for w, _ in abij], axis=1)        # (9C, 4C)
    b_abij = jnp.concatenate([b for _, b in abij])                # (4C,)

    # conv_bn_tl / conv_bn_br fused over the [a+b | i+j] input.
    cb_tl, cb_br = fold3("cb_tl"), fold3("cb_br")
    w_cb = tap_block_diag(cb_tl[0], cb_br[0])                     # (18C, 2C)
    b_cb = jnp.concatenate([cb_tl[1], cb_br[1]])                  # (2C,)

    x1_tl, x1_br = fold1("cb1x1_tl"), fold1("cb1x1_br")
    w_1x1 = jnp.concatenate([x1_tl[0], x1_br[0]], axis=1)         # (C, 2C)
    b_1x1 = jnp.concatenate([x1_tl[1], x1_br[1]])                 # (2C,)

    # conv_bn_relu3 / conv_bn_relu6 fused over the [tl | br] merged input.
    o_tl, o_br = fold3("cbr3"), fold3("cbr6")
    w_out = tap_block_diag(o_tl[0], o_br[0])                      # (18C, 2C)
    b_out = jnp.concatenate([o_tl[1], o_br[1]])                   # (2C,)

    # conv_relu{1,2,3} / conv_relu{4,5,6} fused: (18C, 6C).
    cr_tl = [fold3(n) for n in ("cr1", "cr2", "cr3")]
    cr_br = [fold3(n) for n in ("cr4", "cr5", "cr6")]
    w_cr = tap_block_diag(jnp.concatenate([w for w, _ in cr_tl], axis=1),
                          jnp.concatenate([w for w, _ in cr_br], axis=1))
    b_cr = jnp.concatenate([b for _, b in cr_tl] + [b for _, b in cr_br])

    def head_block(ht, eb, of):
        # (3C, hp) block-diagonal 1x1 head for one branch:
        #   rows [0:C]   (conv_relu heatmap features)   -> cols [0:nc]
        #   rows [C:2C]  (embedding features)           -> col  [nc]
        #   rows [2C:3C] (offset features)              -> cols [nc+1:nc+3]
        w = jnp.zeros((3 * C, hp), jnp.float32)
        w = w.at[0:C, 0:nc].set(ht[0])
        w = w.at[C:2 * C, nc:nc + 1].set(eb[0])
        w = w.at[2 * C:3 * C, nc + 1:nc + 3].set(of[0])
        b = jnp.zeros((hp,), jnp.float32)
        b = b.at[0:nc].set(ht[2]).at[nc].set(eb[2][0]).at[nc + 1:nc + 3].set(of[2])
        return w, b

    h_tl = head_block(p["out_ht_tl"], p["out_eb_tl"], p["out_of_tl"])
    h_br = head_block(p["out_ht_br"], p["out_eb_br"], p["out_of_br"])
    w_head = jnp.zeros((6 * C, 2 * hp), jnp.float32)
    w_head = w_head.at[0:3 * C, 0:hp].set(h_tl[0])
    w_head = w_head.at[3 * C:6 * C, hp:2 * hp].set(h_br[0])       # (6C, 2hp)
    b_head = jnp.concatenate([h_tl[1], h_br[1]])                  # (2hp,)

    bf = lambda a: a.astype(jnp.bfloat16)
    row = lambda a: a.reshape(1, -1)
    packed = {
        "stem_w": bf(stem_w), "stem_b": row(stem_b),
        "w_abij": bf(w_abij), "b_abij": row(b_abij),
        "w_cb": bf(w_cb), "b_cb": row(b_cb),
        "w_1x1": bf(w_1x1), "b_1x1": row(b_1x1),
        "w_out": bf(w_out), "b_out": row(b_out),
        "w_cr": bf(w_cr), "b_cr": row(b_cr),
        "w_head": bf(w_head), "b_head": row(b_head),
    }
    return packed, nc, hp


# ----------------------------------------------------------------------------
# corner_net forward (mirrors the PyTorch module, eval-mode BN)
# ----------------------------------------------------------------------------
def corner_net_forward(packed, x_nchw, *, num_classes, head_pad,
                       roll_matches_numpy):
    N, Cin, H, W = x_nchw.shape
    C = packed["w_1x1"].shape[0]
    HW = H * W
    hp = head_pad
    nc = num_classes

    # NCHW -> NHWC once at the boundary (tiny; channels go to the lane axis).
    x = jnp.transpose(x_nchw, (0, 2, 3, 1)).astype(jnp.float32)

    names = ("stem_w", "stem_b", "w_abij", "b_abij", "w_cb", "b_cb",
             "w_1x1", "b_1x1", "w_out", "b_out", "w_cr", "b_cr",
             "w_head", "b_head")
    weights = [packed[k] for k in names]

    def rep_spec(a):
        # Full-array weight block, identical for every grid step (fetched once).
        return pl.BlockSpec(a.shape, lambda n: (0,) * a.ndim)

    # Scoped-VMEM budget sized from the actual buffers (+4x headroom for
    # double-buffered I/O, vreg spills and compiler temporaries), floored at
    # the 32 MiB default and capped below v7x's 64 MiB per-TC VMEM.
    # TODO(synk): at real CornerNet resolutions add a row-tiled grid axis with
    # a 1-row halo so the (HW, 18C) im2col scratch stays bounded.
    scratch_bytes = ((H + 2) * (W + 2) * 2 * C + HW * 18 * C) * 2     # bf16
    weight_bytes = sum(a.size * a.dtype.itemsize for a in weights)
    io_bytes = 2 * (H * W * Cin * 4 + HW * 2 * hp * 4)
    vmem_limit = int(min(max(4 * (scratch_bytes + weight_bytes + io_bytes),
                             32 * 2 ** 20), 56 * 2 ** 20))

    kernel = functools.partial(_corner_net_kernel,
                               roll_matches_numpy=roll_matches_numpy)

    out = pl.pallas_call(
        kernel,
        out_shape=jax.ShapeDtypeStruct((N, HW, 2 * hp), jnp.float32),
        grid=(N,),
        in_specs=[pl.BlockSpec((1, H, W, Cin), lambda n: (n, 0, 0, 0))]
                 + [rep_spec(a) for a in weights],
        out_specs=pl.BlockSpec((1, HW, 2 * hp), lambda n: (n, 0, 0)),
        scratch_shapes=[
            # zero-bordered bf16 conv input (holds the fused [tl | br] 2C chans)
            pltpu.VMEM((H + 2, W + 2, 2 * C), jnp.bfloat16),
            # bf16 im2col patch matrix for the fused K<=18C convs
            pltpu.VMEM((HW, 18 * C), jnp.bfloat16),
        ],
        compiler_params=pltpu.CompilerParams(
            # Batch-parallel grid: N >= 2 is needed to occupy both v7x
            # TensorCores (v5e/v6e are single-TC, so this is a no-op there).
            dimension_semantics=("parallel",),
            vmem_limit_bytes=vmem_limit),
    )(x, *weights)

    # (N, H*W, 2*hp) -> NCHW heads.  The head slab is ~16 KiB per image, so
    # this boundary reshape/transpose is negligible.
    out = jnp.transpose(out.reshape(N, H, W, 2 * hp), (0, 3, 1, 2))
    heat_tl = out[:, 0:nc]
    emb_tl = out[:, nc:nc + 1]
    off_tl = out[:, nc + 1:nc + 3]
    heat_br = out[:, hp:hp + nc]
    emb_br = out[:, hp + nc:hp + nc + 1]
    off_br = out[:, hp + nc + 1:hp + nc + 3]
    return [heat_tl, heat_br, emb_tl, emb_br, off_tl, off_br]


if __name__ == "__main__":
    num_classes, inplanes, in_ch = 4, 32, 4
    N, H, W = 2, 16, 16

    key = jax.random.PRNGKey(0)
    pkey, xkey = jax.random.split(key)
    params = init_params(pkey, in_ch, inplanes, num_classes)
    x = jax.random.normal(xkey, (N, in_ch, H, W), jnp.float32)

    packed, nc, hp = pack_params(params)            # one-time parameter prep
    roll_numpy = roll_matches_numpy_convention()    # probe rotation direction
    fwd = jax.jit(functools.partial(corner_net_forward, num_classes=nc,
                                    head_pad=hp,
                                    roll_matches_numpy=roll_numpy))
    outs = jax.block_until_ready(fwd(packed, x))

    assert outs[0].shape == (N, num_classes, H, W)   # heatmaps_tl
    assert outs[1].shape == (N, num_classes, H, W)   # heatmaps_br
    assert outs[2].shape == (N, 1, H, W)             # embeddings_tl
    assert outs[3].shape == (N, 1, H, W)             # embeddings_br
    assert outs[4].shape == (N, 2, H, W)             # offsets_tl
    assert outs[5].shape == (N, 2, H, W)             # offsets_br
    assert all(bool(jnp.all(jnp.isfinite(o))) for o in outs)
    print("KERNEL_OK")
</pallas_src>

<mosaic_0001>
module attributes {stable_mosaic.version = 11 : i64} {
  func.func @_roll_probe_kernel(%arg0: memref<8x128xf32, #tpu.memory_space<vmem>>, %arg1: memref<8x128xf32, #tpu.memory_space<vmem>>) attributes {dimension_semantics = [], scalar_prefetch = 0 : i64, scratch_operands = 0 : i64, tpu.core_type = #tpu.core_type<tc>} {
    %c0 = arith.constant 0 : index
    %c0_0 = arith.constant 0 : index
    %0 = vector.load %arg0[%c0, %c0_0] : memref<8x128xf32, #tpu.memory_space<vmem>>, vector<8x128xf32>
    %c1_i32 = arith.constant 1 : i32
    %1 = tpu.dynamic_rotate %0 by %c1_i32 dim 0 : vector<8x128xf32>, i32 -> vector<8x128xf32>
    %c0_1 = arith.constant 0 : index
    %c0_2 = arith.constant 0 : index
    %2 = vector.load %arg1[%c0_1, %c0_2] : memref<8x128xf32, #tpu.memory_space<vmem>>, vector<8x128xf32>
    tpu.vector_store %arg1[%c0_1, %c0_2], %1 {strides = array<i32>} : memref<8x128xf32, #tpu.memory_space<vmem>>, vector<8x128xf32>,
    return
  }
}

</mosaic_0001>

<llo_original>
// kernel: tpu_custom_call.1
$region0: #{tpu_custom_call.1}
  #allocation0 [shape = 'u32[]', space=smem, size = 0x4, offset = 0x4, fixed_abs, tag = 'smem constant byte address 0x4 - core index']
  #allocation1 [shape = 'u32[144,128]{1,0:T(1,128)}', space=vmem, size = 0x12000, scoped, tag = 'internal scratch']
  %s0 = inlined_call_operand.hbm [shape: f32[8,128], index: 0, kind: input, shape index: {}]
  %s1 = inlined_call_operand.hbm [shape: f32[8,128], index: 1, kind: output, shape index: {}]
  %s2 = sld [smem:[#allocation0]]
  $region18: #{tpu_custom_call.1} parent=0
    _
  %s4 = ssub.s32 1, %s2
  %s5 = scalar_select 0, %s4, %s2
  $region1: #{tpu_custom_call.1} parent=0
    #allocation2 [shape = 'u8[4096]{0}', space=vmem, size = 0x1000, scoped, tag = 'input window, operand 0, single buffered']
    #allocation3 [shape = 's32[1]{0}', space=sflag, size = 0x4, scoped, tag = 'scoped memory for tpu_custom_call.1']
    #allocation4 [shape = 's32[1]{0}', space=sflag, size = 0x4, scoped, tag = 'scoped memory for tpu_custom_call.1']
    #allocation5 [shape = 'u8[4096]{0}', space=vmem, size = 0x1000, scoped, tag = 'output window, operand 0, single buffered']
    %6 = vsyncpa [#allocation3], 0
    %7 = vsyncpa [#allocation4], 0
    // Predicated region
    $region2: #{tpu_custom_call.1} parent=1 // pred_check
      _
    $region3: #{tpu_custom_call.1} parent=1 // pred_check_branch
      %9 = sbr.rel (0) target = $region5
    $region4: #{tpu_custom_call.1} parent=1 // pred_region
      %s11 = ssub.s32 128, 128
      %12 = vsyncadd [#allocation3], %s11
      %s14 = sshll.u32 [#allocation2], 4
      %s15 = int_to_ptr.vmem [resolvable:$true] %s14
      %17 = dma.hbm_to_vmem [thread:$0]  %s0, 128, %s15, [#allocation3]
    $region5: #{tpu_custom_call.1} parent=1 // pred_fallthru
      _
    // Predicated region
    $region6: #{tpu_custom_call.1} parent=1 // pred_check
      _
    $region7: #{tpu_custom_call.1} parent=1 // pred_check_branch
      %19 = sbr.rel (0) target = $region9
    $region8: #{tpu_custom_call.1} parent=1 // pred_region
      %20 = dma.done [#allocation3], 128
    $region9: #{tpu_custom_call.1} parent=1 // pred_fallthru
      _
    %v21 = vld [vmem:[#allocation2] sm:$0xff]
    %v22 = vrot.slane %v21, 7
    %23 = vst [vmem:[#allocation5] sm:$0xff] %v22
    // Predicated region
    $region10: #{tpu_custom_call.1} parent=1 // pred_check
      _
    $region11: #{tpu_custom_call.1} parent=1 // pred_check_branch
      %25 = sbr.rel (0) target = $region13
    $region12: #{tpu_custom_call.1} parent=1 // pred_region
      %s27 = ssub.s32 128, 128
      %28 = vsyncadd [#allocation4], %s27
      %s30 = sshll.u32 [#allocation5], 4
      %s31 = int_to_ptr.vmem [resolvable:$true] %s30
      %33 = dma.vmem_to_hbm [thread:$0]  %s31, 128, %s1, [#allocation4]
    $region13: #{tpu_custom_call.1} parent=1 // pred_fallthru
      _
    // Predicated region
    $region14: #{tpu_custom_call.1} parent=1 // pred_check
      _
    $region15: #{tpu_custom_call.1} parent=1 // pred_check_branch
      %35 = sbr.rel (0) target = $region17
    $region16: #{tpu_custom_call.1} parent=1 // pred_region
      %36 = dma.done [#allocation4], 128
    $region17: #{tpu_custom_call.1} parent=1 // pred_fallthru
      _
    %37 = vsyncpa [#allocation3], 1
    %38 = vsyncpa [#allocation4], 1

</llo_original>
